<compile_context>
chip_gen: v5e
topology: v5e:2x2
jax: 0.10.0
libtpu: 0.0.40
codegen_flags: <defaults>
</compile_context>

<pallas_src>
import functools

import jax
import jax.numpy as jnp
from jax.experimental import pallas as pl
from jax.experimental.pallas import tpu as pltpu

_LANE = 128


def _norm_kernel(x_ref, alpha_ref, bias_ref, o_ref, *, eps, inv_nm1):
    # x_ref: (Bblk, C, tile_S) — normalize every (batch, seq) column over C (axis=1).
    x = x_ref[...].astype(jnp.float32)

    mean = jnp.mean(x, axis=1, keepdims=True)                     # (Bblk, 1, tile_S)
    centered = x - mean
    # torch.std default is unbiased: divide by (N - 1).
    var = jnp.sum(centered * centered, axis=1, keepdims=True) * inv_nm1
    std = jnp.sqrt(var)

    # Exact divide, but only on the (Bblk, 1, tile_S) statistics row (~1/C of a full-tile
    # op) — keeps numerical parity with torch while staying essentially free.
    inv = 1.0 / (std + eps)

    alpha = alpha_ref[...].astype(jnp.float32)                    # (1, C, 1)
    bias = bias_ref[...].astype(jnp.float32)                      # (1, C, 1)

    o_ref[...] = (centered * inv * alpha + bias).astype(o_ref.dtype)


def _vmem_capacity_bytes():
    """Per-TensorCore VMEM capacity; conservative (v7x) fallback if unqueryable."""
    try:
        cap = getattr(pltpu.get_tpu_info(), "vmem_capacity_bytes", None)
        if cap:
            return int(cap)
    except Exception:
        pass
    return 64 * 1024 * 1024


def _choose_tiles(B, C, S, itemsize, max_block_bytes=None):
    """Pick (Bblk, tile_S, vmem_limit_bytes) from a generation-aware VMEM budget."""
    vmem_cap = _vmem_capacity_bytes()
    # Budget for the double-buffered input+output blocks (4 block-sized copies):
    # ~24 MiB on v5e/v6e (128 MiB VMEM), ~12.8 MiB on v7x (64 MiB VMEM).
    io_budget = min(vmem_cap // 5, 24 * 1024 * 1024)
    if max_block_bytes is not None:  # test hook: force small blocks
        io_budget = min(io_budget, 4 * max_block_bytes)
    max_block_elems = max(io_budget // (4 * itemsize), 8 * _LANE)

    if C * S <= max_block_elems:
        # Small per-batch slab: fold several batch elements into one block so the
        # ~0.35 us per-step overhead and small strided DMAs are amortized.
        b_blk = int(min(B, max(1, max_block_elems // (C * S))))
        tile_s = S
    else:
        b_blk = 1
        # Lane-dense seq tile (multiple of 128), as large as the budget allows.
        tile_s = max(_LANE, ((max_block_elems // C) // _LANE) * _LANE)
        tile_s = int(min(tile_s, S))  # == S (full dim) or a multiple of 128 below S

    # Keep >= ~4 parallel grid steps so both v7x TensorCores get work, but never shrink
    # blocks below ~1 MiB (per-step overhead would start to dominate again).
    def n_steps(bb, ts):
        return pl.cdiv(B, bb) * pl.cdiv(S, ts)

    while n_steps(b_blk, tile_s) < 4:
        if b_blk * C * tile_s * itemsize < (1 << 20):
            break
        if b_blk > 1:
            b_blk = (b_blk + 1) // 2
        elif tile_s % (2 * _LANE) == 0:
            tile_s //= 2
        else:
            break

    # Scoped VMEM limit: double-buffered I/O blocks + f32 temporaries + headroom,
    # clamped well inside physical VMEM for every generation.
    block_elems = b_blk * C * tile_s
    io_bytes = 4 * block_elems * itemsize           # in + out, double-buffered
    temp_bytes = 3 * block_elems * 4                # f32 x / centered / out temporaries
    vmem_limit = io_bytes + temp_bytes + (4 << 20)
    vmem_limit = max(vmem_limit, 32 << 20)
    vmem_limit = min(vmem_limit, (vmem_cap * 3) // 4)

    return b_blk, tile_s, int(vmem_limit)


def norm_forward(x, alpha, bias, eps=1e-6, *, max_block_bytes=None):
    """x: (B, d_model, seq), matching the PyTorch module's expected input layout."""
    B, C, S = x.shape
    if C < 2:
        raise ValueError("d_model must be > 1 (unbiased std divides by N-1).")

    itemsize = jnp.dtype(x.dtype).itemsize
    b_blk, tile_s, vmem_limit = _choose_tiles(B, C, S, itemsize, max_block_bytes)
    grid = (pl.cdiv(B, b_blk), pl.cdiv(S, tile_s))

    kernel = functools.partial(_norm_kernel, eps=float(eps), inv_nm1=1.0 / (C - 1))

    return pl.pallas_call(
        kernel,
        out_shape=jax.ShapeDtypeStruct((B, C, S), x.dtype),
        grid=grid,
        in_specs=[
            pl.BlockSpec((b_blk, C, tile_s), lambda b, s: (b, 0, s)),
            pl.BlockSpec((1, C, 1), lambda b, s: (0, 0, 0)),
            pl.BlockSpec((1, C, 1), lambda b, s: (0, 0, 0)),
        ],
        out_specs=pl.BlockSpec((b_blk, C, tile_s), lambda b, s: (b, 0, s)),
        compiler_params=pltpu.CompilerParams(
            dimension_semantics=("parallel", "parallel"),
            vmem_limit_bytes=vmem_limit,
        ),
    )(x, alpha.reshape(1, C, 1), bias.reshape(1, C, 1))


def _reference(x, alpha, bias, eps=1e-6):
    # Pure-JAX reference mirroring the PyTorch forward (unbiased std, eps added to std).
    xt = jnp.swapaxes(x, -1, -2)
    mean = jnp.mean(xt, axis=-1, keepdims=True)
    std = jnp.sqrt(
        jnp.sum((xt - mean) ** 2, axis=-1, keepdims=True) / (xt.shape[-1] - 1)
    )
    norm = alpha * (xt - mean) / (std + eps) + bias
    return jnp.swapaxes(norm, -1, -2)


if __name__ == "__main__":
    key = jax.random.PRNGKey(0)

    # (batch, d_model, seq, forced per-block byte cap) — the last two cases force tiny
    # blocks to exercise the ragged seq-tile and ragged batch-fold edge-block paths.
    cases = [
        (2, 32, 8, None),
        (3, 48, 24, None),
        (2, 64, 300, 64 * 1024),
        (3, 16, 160, 24 * 1024),
    ]

    for (batch, d_model, seq, blk_cap) in cases:
        key, kx, ka, kb = jax.random.split(key, 4)
        x = jax.random.normal(kx, (batch, d_model, seq), dtype=jnp.float32)
        # Norm.__init__ uses alpha=ones, bias=zeros; randomize to exercise broadcasts.
        alpha = 1.0 + 0.1 * jax.random.normal(ka, (d_model,), dtype=jnp.float32)
        bias = 0.1 * jax.random.normal(kb, (d_model,), dtype=jnp.float32)

        out = jax.block_until_ready(
            norm_forward(x, alpha, bias, eps=1e-6, max_block_bytes=blk_cap)
        )
        ref = _reference(x, alpha, bias, eps=1e-6)

        assert out.shape == x.shape
        assert jnp.allclose(out, ref, atol=1e-4, rtol=1e-4), (
            f"mismatch vs reference for shape {(batch, d_model, seq)}"
        )

    print("KERNEL_OK")
</pallas_src>

<mosaic_0001>
module attributes {stable_mosaic.version = 11 : i64} {
  func.func @_norm_kernel(%arg0: i32, %arg1: i32, %arg2: memref<2x32x8xf32, #tpu.memory_space<vmem>>, %arg3: memref<1x32x1xf32, #tpu.memory_space<vmem>>, %arg4: memref<1x32x1xf32, #tpu.memory_space<vmem>>, %arg5: memref<2x32x8xf32, #tpu.memory_space<vmem>>) attributes {dimension_semantics = [#tpu.dimension_semantics<parallel>, #tpu.dimension_semantics<parallel>], iteration_bounds = array<i64: 1, 1>, scalar_prefetch = 0 : i64, scratch_operands = 0 : i64, tpu.core_type = #tpu.core_type<tc>, window_params = [{transform_indices = @transform_0, window_bounds = array<i64: 2, 32, 8>}, {pipeline_mode = #tpu.pipeline_mode<synchronous>, transform_indices = @transform_1, window_bounds = array<i64: 1, 32, 1>}, {pipeline_mode = #tpu.pipeline_mode<synchronous>, transform_indices = @transform_2, window_bounds = array<i64: 1, 32, 1>}, {transform_indices = @transform_3, window_bounds = array<i64: 2, 32, 8>}]} {
    %c0 = arith.constant 0 : index
    %c0_0 = arith.constant 0 : index
    %c0_1 = arith.constant 0 : index
    %0 = vector.load %arg2[%c0, %c0_0, %c0_1] : memref<2x32x8xf32, #tpu.memory_space<vmem>>, vector<2x32x8xf32>
    %cst = arith.constant dense<0.000000e+00> : vector<2x8xf32>
    %1 = vector.multi_reduction <add>, %0, %cst [1] : vector<2x32x8xf32> to vector<2x8xf32>
    %2 = vector.shape_cast %1 : vector<2x8xf32> to vector<2x1x8xf32>
    %cst_2 = arith.constant 3.200000e+01 : f32
    %3 = vector.broadcast %cst_2 : f32 to vector<2x1x8xf32>
    %4 = arith.divf %2, %3 : vector<2x1x8xf32>
    %5 = vector.broadcast %4 : vector<2x1x8xf32> to vector<2x32x8xf32>
    %6 = arith.subf %0, %5 : vector<2x32x8xf32>
    %7 = arith.mulf %6, %6 : vector<2x32x8xf32>
    %cst_3 = arith.constant dense<0.000000e+00> : vector<2x8xf32>
    %8 = vector.multi_reduction <add>, %7, %cst_3 [1] : vector<2x32x8xf32> to vector<2x8xf32>
    %9 = vector.shape_cast %8 : vector<2x8xf32> to vector<2x1x8xf32>
    %cst_4 = arith.constant 0.0322580636 : f32
    %10 = vector.broadcast %cst_4 : f32 to vector<2x1x8xf32>
    %11 = arith.mulf %9, %10 : vector<2x1x8xf32>
    %12 = math.sqrt %11 : vector<2x1x8xf32>
    %cst_5 = arith.constant 9.99999997E-7 : f32
    %13 = vector.broadcast %cst_5 : f32 to vector<2x1x8xf32>
    %14 = arith.addf %12, %13 : vector<2x1x8xf32>
    %cst_6 = arith.constant 1.000000e+00 : f32
    %15 = vector.broadcast %cst_6 : f32 to vector<2x1x8xf32>
    %16 = arith.divf %15, %14 : vector<2x1x8xf32>
    %c0_7 = arith.constant 0 : index
    %c0_8 = arith.constant 0 : index
    %c0_9 = arith.constant 0 : index
    %17 = vector.load %arg3[%c0_7, %c0_8, %c0_9] : memref<1x32x1xf32, #tpu.memory_space<vmem>>, vector<1x32x1xf32>
    %c0_10 = arith.constant 0 : index
    %c0_11 = arith.constant 0 : index
    %c0_12 = arith.constant 0 : index
    %18 = vector.load %arg4[%c0_10, %c0_11, %c0_12] : memref<1x32x1xf32, #tpu.memory_space<vmem>>, vector<1x32x1xf32>
    %19 = vector.broadcast %16 : vector<2x1x8xf32> to vector<2x32x8xf32>
    %20 = arith.mulf %6, %19 : vector<2x32x8xf32>
    %21 = vector.broadcast %17 : vector<1x32x1xf32> to vector<2x32x8xf32>
    %22 = arith.mulf %20, %21 : vector<2x32x8xf32>
    %23 = vector.broadcast %18 : vector<1x32x1xf32> to vector<2x32x8xf32>
    %24 = arith.addf %22, %23 : vector<2x32x8xf32>
    %c0_13 = arith.constant 0 : index
    %c0_14 = arith.constant 0 : index
    %c0_15 = arith.constant 0 : index
    %25 = vector.load %arg5[%c0_13, %c0_14, %c0_15] : memref<2x32x8xf32, #tpu.memory_space<vmem>>, vector<2x32x8xf32>
    tpu.vector_store %arg5[%c0_13, %c0_14, %c0_15], %24 {strides = array<i32>} : memref<2x32x8xf32, #tpu.memory_space<vmem>>, vector<2x32x8xf32>,
    return
  }
  func.func @transform_0(%arg0: i32, %arg1: i32) -> (i32, i32, i32) {
    %c0_i32 = arith.constant 0 : i32
    %c0_i32_0 = arith.constant 0 : i32
    return %arg0, %c0_i32, %arg1 : i32, i32, i32
  }
  func.func @transform_1(%arg0: i32, %arg1: i32) -> (i32, i32, i32) {
    %c0_i32 = arith.constant 0 : i32
    %c0_i32_0 = arith.constant 0 : i32
    %c0_i32_1 = arith.constant 0 : i32
    %c0_i32_2 = arith.constant 0 : i32
    return %c0_i32, %c0_i32_0, %c0_i32_1 : i32, i32, i32
  }
  func.func @transform_2(%arg0: i32, %arg1: i32) -> (i32, i32, i32) {
    %c0_i32 = arith.constant 0 : i32
    %c0_i32_0 = arith.constant 0 : i32
    %c0_i32_1 = arith.constant 0 : i32
    %c0_i32_2 = arith.constant 0 : i32
    return %c0_i32, %c0_i32_0, %c0_i32_1 : i32, i32, i32
  }
  func.func @transform_3(%arg0: i32, %arg1: i32) -> (i32, i32, i32) {
    %c0_i32 = arith.constant 0 : i32
    %c0_i32_0 = arith.constant 0 : i32
    return %arg0, %c0_i32, %arg1 : i32, i32, i32
  }
}

</mosaic_0001>

<llo_original>
// kernel: tpu_custom_call.1
$region0: #{tpu_custom_call.1}
  #allocation0 [shape = 'u32[]', space=smem, size = 0x4, offset = 0x4, fixed_abs, tag = 'smem constant byte address 0x4 - core index']
  #allocation1 [shape = 'u32[72,128]{1,0:T(1,128)}', space=vmem, size = 0x9000, scoped, tag = 'internal scratch']
  %s0 = inlined_call_operand.vmem [shape: f32[2,32,8], index: 0, kind: input, shape index: {}]
  %s1 = inlined_call_operand.vmem [shape: f32[1,32,1], index: 1, kind: input, shape index: {}]
  %s2 = inlined_call_operand.vmem [shape: f32[1,32,1], index: 2, kind: input, shape index: {}]
  %s3 = inlined_call_operand.vmem [shape: f32[2,32,8], index: 3, kind: output, shape index: {}]
  %s4 = sld [smem:[#allocation0]]
  $region22: #{tpu_custom_call.1} parent=0
    _
  %s6 = ssub.s32 1, %s4
  %s7 = scalar_select 0, %s6, %s4
  // Predicated region
  $region2: #{tpu_custom_call.1} parent=0 // pred_check
    _
  $region3: #{tpu_custom_call.1} parent=0 // pred_check_branch
    %9 = sbr.rel (0) target = $region5
  $region4: #{tpu_custom_call.1} parent=0 // pred_region
    _
  $region5: #{tpu_custom_call.1} parent=0 // pred_fallthru
    _
  // Predicated region
  $region6: #{tpu_custom_call.1} parent=0 // pred_check
    _
  $region7: #{tpu_custom_call.1} parent=0 // pred_check_branch
    %11 = sbr.rel (0) target = $region9
  $region8: #{tpu_custom_call.1} parent=0 // pred_region
    _
  $region9: #{tpu_custom_call.1} parent=0 // pred_fallthru
    _
  // Predicated region
  $region10: #{tpu_custom_call.1} parent=0 // pred_check
    _
  $region11: #{tpu_custom_call.1} parent=0 // pred_check_branch
    %13 = sbr.rel (0) target = $region13
  $region12: #{tpu_custom_call.1} parent=0 // pred_region
    _
  $region13: #{tpu_custom_call.1} parent=0 // pred_fallthru
    _
  %v14 = vld [vmem:[%s0] sm:$0xff]
  %v15 = vld [vmem:[%s0 + $0x8] sm:$0xff]
  %v16 = vld [vmem:[%s0 + $0x10] sm:$0xff]
  %v17 = vld [vmem:[%s0 + $0x18] sm:$0xff]
  %v18 = vld [vmem:[%s0 + $0x20] sm:$0xff]
  %v19 = vld [vmem:[%s0 + $0x28] sm:$0xff]
  %v20 = vld [vmem:[%s0 + $0x30] sm:$0xff]
  %v21 = vld [vmem:[%s0 + $0x38] sm:$0xff]
  %vm22 = vcmask 64512
  %v23 = vsel %vm22, %v14, 0.0
  %v24 = vsel %vm22, %v15, 0.0
  %v25 = vadd.f32 %v23, %v24
  %v26 = vsel %vm22, %v16, 0.0
  %v27 = vadd.f32 %v25, %v26
  %v28 = vsel %vm22, %v17, 0.0
  %v29 = vadd.f32 %v27, %v28
  %v30 = vrot.slane %v29, 4
  %v31 = vadd.f32 %v29, %v30
  %v32 = vrot.slane %v31, 2
  %v33 = vadd.f32 %v31, %v32
  %v34 = vrot.slane %v33, 1
  %v35 = vadd.f32 %v33, %v34
  %v36 = vsel %vm22, %v18, 0.0
  %v37 = vsel %vm22, %v19, 0.0
  %v38 = vadd.f32 %v36, %v37
  %v39 = vsel %vm22, %v20, 0.0
  %v40 = vadd.f32 %v38, %v39
  %v41 = vsel %vm22, %v21, 0.0
  %v42 = vadd.f32 %v40, %v41
  %v43 = vrot.slane %v42, 4
  %v44 = vadd.f32 %v42, %v43
  %v45 = vrot.slane %v44, 2
  %v46 = vadd.f32 %v44, %v45
  %v47 = vrot.slane %v46, 1
  %v48 = vadd.f32 %v46, %v47
  %v49 = vrcp.pop 32.0
  %v50 = vmul.f32 32.0, %v49
  %v51 = vsub.f32 1.0, %v50
  %v52 = vmul.f32 %v49, %v51
  %v53 = vadd.f32 %v49, %v52
  %vm54 = vweird.f32 %v49
  %v55 = vsel %vm54, %v49, %v53
  %v56 = vmul.f32 %v35, %v55
  %v57 = vmul.f32 %v48, %v55
  %v58 = vsub.f32 %v14, %v56
  %v59 = vsub.f32 %v15, %v56
  %v60 = vsub.f32 %v16, %v56
  %v61 = vsub.f32 %v17, %v56
  %v62 = vsub.f32 %v18, %v57
  %v63 = vsub.f32 %v19, %v57
  %v64 = vsub.f32 %v20, %v57
  %v65 = vsub.f32 %v21, %v57
  %v66 = vmul.f32 %v58, %v58
  %v67 = vmul.f32 %v59, %v59
  %v68 = vmul.f32 %v60, %v60
  %v69 = vmul.f32 %v61, %v61
  %v70 = vmul.f32 %v62, %v62
  %v71 = vmul.f32 %v63, %v63
  %v72 = vmul.f32 %v64, %v64
  %v73 = vmul.f32 %v65, %v65
  %v74 = vsel %vm22, %v66, 0.0
  %v75 = vsel %vm22, %v67, 0.0
  %v76 = vadd.f32 %v74, %v75
  %v77 = vsel %vm22, %v68, 0.0
  %v78 = vadd.f32 %v76, %v77
  %v79 = vsel %vm22, %v69, 0.0
  %v80 = vadd.f32 %v78, %v79
  %v81 = vrot.slane %v80, 4
  %v82 = vadd.f32 %v80, %v81
  %v83 = vrot.slane %v82, 2
  %v84 = vadd.f32 %v82, %v83
  %v85 = vrot.slane %v84, 1
  %v86 = vadd.f32 %v84, %v85
  %v87 = vsel %vm22, %v70, 0.0
  %v88 = vsel %vm22, %v71, 0.0
  %v89 = vadd.f32 %v87, %v88
  %v90 = vsel %vm22, %v72, 0.0
  %v91 = vadd.f32 %v89, %v90
  %v92 = vsel %vm22, %v73, 0.0
  %v93 = vadd.f32 %v91, %v92
  %v94 = vrot.slane %v93, 4
  %v95 = vadd.f32 %v93, %v94
  %v96 = vrot.slane %v95, 2
  %v97 = vadd.f32 %v95, %v96
  %v98 = vrot.slane %v97, 1
  %v99 = vadd.f32 %v97, %v98
  %v100 = vmul.f32 %v86, 0.032258064
  %v101 = vmul.f32 %v99, 0.032258064
  %v102 = vrsqrt.pop %v100
  %v103 = vmul.f32 %v102, %v100
  %v104 = vmul.f32 %v103, %v102
  %v105 = vmul.f32 0.5, %v104
  %v106 = vsub.f32 1.5, %v105
  %v107 = vmul.f32 %v102, %v106
  %v108 = vmul.f32 %v100, %v107
  %vm109 = vcmp.eq.f32.partialorder %v100, inf
  %v110 = vsel %vm109, %v100, %v108
  %vm111 = vcmp.eq.f32.partialorder %v100, 0.0
  %v112 = vand.u32 %v100, 2147483648
  %v113 = vsel %vm111, %v112, %v110
  %v114 = vrsqrt.pop %v101
  %v115 = vmul.f32 %v114, %v101
  %v116 = vmul.f32 %v115, %v114
  %v117 = vmul.f32 0.5, %v116
  %v118 = vsub.f32 1.5, %v117
  %v119 = vmul.f32 %v114, %v118
  %v120 = vmul.f32 %v101, %v119
  %vm121 = vcmp.eq.f32.partialorder %v101, inf
  %v122 = vsel %vm121, %v101, %v120
  %vm123 = vcmp.eq.f32.partialorder %v101, 0.0
  %v124 = vand.u32 %v101, 2147483648
  %v125 = vsel %vm123, %v124, %v122
  %v126 = vadd.f32 %v113, 1e-06
  %v127 = vadd.f32 %v125, 1e-06
  %v128 = vrcp.pop %v126
  %v129 = vmul.f32 %v126, %v128
  %v130 = vsub.f32 1.0, %v129
  %v131 = vmul.f32 %v128, %v130
  %v132 = vadd.f32 %v128, %v131
  %vm133 = vweird.f32 %v126
  %vm134 = vweird.f32 %v128
  %vm135 = vmor %vm133, %vm134
  %v136 = vsel %vm135, %v128, %v132
  %v137 = vand.u32 2147483647, %v126
  %vm138 = vcmp.eq.f32.partialorder %v137, 8.507059e+37
  %v139 = vand.u32 %v126, 2147483648
  %v140 = vor.u32 1.1754944e-38, %v139
  %v141 = vsel %vm138, %v140, %v136
  %v142 = vmul.f32 1.0, %v141
  %v143 = vrcp.pop %v127
  %v144 = vmul.f32 %v127, %v143
  %v145 = vsub.f32 1.0, %v144
  %v146 = vmul.f32 %v143, %v145
  %v147 = vadd.f32 %v143, %v146
  %vm148 = vweird.f32 %v127
  %vm149 = vweird.f32 %v143
  %vm150 = vmor %vm148, %vm149
  %v151 = vsel %vm150, %v143, %v147
  %v152 = vand.u32 2147483647, %v127
  %vm153 = vcmp.eq.f32.partialorder %v152, 8.507059e+37
  %v154 = vand.u32 %v127, 2147483648
  %v155 = vor.u32 1.1754944e-38, %v154
  %v156 = vsel %vm153, %v155, %v151
  %v157 = vmul.f32 1.0, %v156
  %v158 = vld [vmem:[%s1] sm:$0xff]
  %v159 = vld [vmem:[%s1 + $0x8] sm:$0xff]
  %v160 = vld [vmem:[%s1 + $0x10] sm:$0xff]
  %v161 = vld [vmem:[%s1 + $0x18] sm:$0xff]
  %v162 = vld [vmem:[%s2] sm:$0xff]
  %v163 = vld [vmem:[%s2 + $0x8] sm:$0xff]
  %v164 = vld [vmem:[%s2 + $0x10] sm:$0xff]
  %v165 = vld [vmem:[%s2 + $0x18] sm:$0xff]
  %v166 = vmul.f32 %v58, %v142
  %v167 = vmul.f32 %v59, %v142
  %v168 = vmul.f32 %v60, %v142
  %v169 = vmul.f32 %v61, %v142
  %v170 = vmul.f32 %v62, %v157
  %v171 = vmul.f32 %v63, %v157
  %v172 = vmul.f32 %v64, %v157
  %v173 = vmul.f32 %v65, %v157
  %175 = vset.pattern.permute.xlu0 0
  %176 = vperm.xlu0 %175, %v158
  %v177 = vpop.permute.xlu0 %176
  %180 = vset.pattern.permute.xlu0 0
  %181 = vperm.xlu0 %180, %v159
  %v182 = vpop.permute.xlu0 %181
  %185 = vset.pattern.permute.xlu0 0
  %186 = vperm.xlu0 %185, %v160
  %v187 = vpop.permute.xlu0 %186
  %190 = vset.pattern.permute.xlu0 0
  %191 = vperm.xlu0 %190, %v161
  %v192 = vpop.permute.xlu0 %191
  %v194 = vmul.f32 %v166, %v177
  %v195 = vmul.f32 %v167, %v182
  %v196 = vmul.f32 %v168, %v187
  %v197 = vmul.f32 %v169, %v192
  %v198 = vmul.f32 %v170, %v177
  %v199 = vmul.f32 %v171, %v182
  %v200 = vmul.f32 %v172, %v187
  %v201 = vmul.f32 %v173, %v192
  %203 = vset.pattern.permute.xlu0 0
  %204 = vperm.xlu0 %203, %v162
  %v205 = vpop.permute.xlu0 %204
  %208 = vset.pattern.permute.xlu0 0
  %209 = vperm.xlu0 %208, %v163
  %v210 = vpop.permute.xlu0 %209
  %213 = vset.pattern.permute.xlu0 0
  %214 = vperm.xlu0 %213, %v164
  %v215 = vpop.permute.xlu0 %214
  %218 = vset.pattern.permute.xlu0 0
  %219 = vperm.xlu0 %218, %v165
  %v220 = vpop.permute.xlu0 %219
  %v222 = vadd.f32 %v194, %v205
  %v223 = vadd.f32 %v195, %v210
  %v224 = vadd.f32 %v196, %v215
  %v225 = vadd.f32 %v197, %v220
  %v226 = vadd.f32 %v198, %v205
  %v227 = vadd.f32 %v199, %v210
  %v228 = vadd.f32 %v200, %v215
  %v229 = vadd.f32 %v201, %v220
  %230 = vst.msk [vmem:[%s3] sm:$0xff] %vm22, %v222
  %231 = vst.msk [vmem:[%s3 + $0x8] sm:$0xff] %vm22, %v223
  %232 = vst.msk [vmem:[%s3 + $0x10] sm:$0xff] %vm22, %v224
  %233 = vst.msk [vmem:[%s3 + $0x18] sm:$0xff] %vm22, %v225
  %234 = vst.msk [vmem:[%s3 + $0x20] sm:$0xff] %vm22, %v226
  %235 = vst.msk [vmem:[%s3 + $0x28] sm:$0xff] %vm22, %v227
  %236 = vst.msk [vmem:[%s3 + $0x30] sm:$0xff] %vm22, %v228
  %237 = vst.msk [vmem:[%s3 + $0x38] sm:$0xff] %vm22, %v229
  // Predicated region
  $region14: #{tpu_custom_call.1} parent=0 // pred_check
    _
  $region15: #{tpu_custom_call.1} parent=0 // pred_check_branch
    %239 = sbr.rel (0) target = $region17
  $region16: #{tpu_custom_call.1} parent=0 // pred_region
    _
  $region17: #{tpu_custom_call.1} parent=0 // pred_fallthru
    _
  // Predicated region
  $region18: #{tpu_custom_call.1} parent=0 // pred_check
    _
  $region19: #{tpu_custom_call.1} parent=0 // pred_check_branch
    %241 = sbr.rel (0) target = $region21
  $region20: #{tpu_custom_call.1} parent=0 // pred_region
    _
  $region21: #{tpu_custom_call.1} parent=0 // pred_fallthru
    _

</llo_original>
